<compile_context>
chip_gen: v7x
topology: tpu7x:2x2x1
jax: 0.10.0
libtpu: 0.0.40
codegen_flags: <defaults>
</compile_context>

<pallas_src>
import functools

import numpy as np
import jax
import jax.numpy as jnp
from jax.experimental import pallas as pl
from jax.experimental.pallas import tpu as pltpu


LANE = 128  # TPU lane width; feature dim is padded to a multiple of this.


def _round_up(x, m):
    return (x + m - 1) // m * m


def gcn_fused_kernel(a_ref, h0_ref, w_ref, b_ref, o_ref, acc_ref, hbuf_ref,
                     *, tm, tk):
    l = pl.program_id(0)          # layer
    i = pl.program_id(1)          # row block of A_hat / output nodes
    k = pl.program_id(2)          # reduction block over neighbour nodes
    nl = pl.num_programs(0)
    nk = pl.num_programs(2)

    # One-time: stage the (padded, bf16) input node features into slot 0 of the
    # ping-pong feature buffer.  h0 is a resident block (constant index map),
    # so it is DMA'd from HBM only once.
    @pl.when((l == 0) & (i == 0) & (k == 0))
    def _():
        hbuf_ref[0] = h0_ref[...]

    cur = l % 2                   # slot holding this layer's input features

    # Zero the per-row-block f32 accumulator at the start of the k reduction.
    @pl.when(k == 0)
    def _():
        acc_ref[...] = jnp.zeros_like(acc_ref)

    # Aggregate:  A_hat[i, k] (tm, tk)  @  h_l[k] (tk, Dp)   — MXU, bf16 in,
    # f32 accumulate.
    k_start = pl.multiple_of(k * tk, tk)
    h_blk = hbuf_ref[cur, pl.ds(k_start, tk), :]
    acc_ref[...] += jnp.dot(a_ref[...], h_blk,
                            preferred_element_type=jnp.float32)

    # Epilogue — once per (layer, row block): feature transform + bias.
    @pl.when(k == nk - 1)
    def _():
        hw = jnp.dot(acc_ref[...].astype(jnp.bfloat16), w_ref[0],
                     preferred_element_type=jnp.float32) + b_ref[0]
        i_start = pl.multiple_of(i * tm, tm)

        # Intermediate layers: stash next layer's input features (bf16,
        # lane-dense) in the other ping-pong slot.
        @pl.when(l < nl - 1)
        def _():
            hbuf_ref[1 - cur, pl.ds(i_start, tm), :] = hw.astype(jnp.bfloat16)

        # Last layer only: write the f32 result.  The output block is
        # VMEM-resident (constant index map) and is flushed to HBM once at the
        # end of the grid.
        @pl.when(l == nl - 1)
        def _():
            o_ref[pl.ds(i_start, tm), :] = hw


def _vmem_limit_bytes(n_pad, dp, tm, tk):
    """Conservative estimate of the VMEM footprint of the fused kernel."""
    a_tiles = 2 * tm * tk * 2            # double-buffered A_hat tile stream (bf16)
    h0 = 2 * n_pad * dp * 2              # resident h0 input (bf16)
    w = 2 * dp * dp * 2                  # per-layer weight (bf16)
    b = 2 * dp * 4                       # per-layer bias (f32)
    out = 2 * n_pad * dp * 4             # resident f32 output
    acc = tm * dp * 4                    # f32 accumulator scratch
    hbuf = 2 * n_pad * dp * 2            # ping-pong feature scratch (bf16)
    need = a_tiles + h0 + w + b + out + acc + hbuf
    # 32 MiB floor (default scoped limit), 64 MiB cap (physical VMEM on v7x).
    return int(min(64 * 1024 * 1024, max(32 * 1024 * 1024, 1.25 * need)))


def gcn_forward(a_hat, h, w_stack, b_stack):
    """Run all GCN layers in one fused, tiled pallas_call.

    a_hat:   (N, N)  normalized adjacency (f32)
    h:       (N, D)  node features (f32)
    w_stack: (L, D, D) layer weights
    b_stack: (L, D)    layer biases
    """
    N, D = h.shape
    L = w_stack.shape[0]

    dp = _round_up(D, LANE)                 # lane-dense feature width
    n128 = _round_up(N, LANE)
    tile = min(512, n128)                   # 512-tiles approach the HBM roofline
    n_pad = _round_up(N, tile)
    tm = tk = tile

    # Pad + cast inputs.  Padded rows/cols of A_hat are zero, padded feature
    # columns of h/W/b are zero, so the [:N, :D] slice of the result is exact.
    a_p = jnp.zeros((n_pad, n_pad), jnp.bfloat16).at[:N, :N].set(
        a_hat.astype(jnp.bfloat16))
    h_p = jnp.zeros((n_pad, dp), jnp.bfloat16).at[:N, :D].set(
        h.astype(jnp.bfloat16))
    w_p = jnp.zeros((L, dp, dp), jnp.bfloat16).at[:, :D, :D].set(
        w_stack.astype(jnp.bfloat16))
    b_p = jnp.zeros((L, 1, dp), jnp.float32).at[:, 0, :D].set(
        b_stack.astype(jnp.float32))

    grid = (L, n_pad // tm, n_pad // tk)

    out = pl.pallas_call(
        functools.partial(gcn_fused_kernel, tm=tm, tk=tk),
        out_shape=jax.ShapeDtypeStruct((n_pad, dp), jnp.float32),
        grid_spec=pltpu.PrefetchScalarGridSpec(
            num_scalar_prefetch=0,
            grid=grid,
            in_specs=[
                # A_hat tile stream (the only big, pipelined input).
                pl.BlockSpec((tm, tk), lambda l, i, k: (i, k)),
                # Initial node features: resident, loaded once.
                pl.BlockSpec((n_pad, dp), lambda l, i, k: (0, 0)),
                # Per-layer weight / bias: resident across (i, k) of a layer.
                pl.BlockSpec((1, dp, dp), lambda l, i, k: (l, 0, 0)),
                pl.BlockSpec((1, 1, dp), lambda l, i, k: (l, 0, 0)),
            ],
            out_specs=pl.BlockSpec((n_pad, dp), lambda l, i, k: (0, 0)),
            scratch_shapes=[
                pltpu.VMEM((tm, dp), jnp.float32),          # AH accumulator
                pltpu.VMEM((2, n_pad, dp), jnp.bfloat16),   # ping-pong features
            ],
        ),
        compiler_params=pltpu.CompilerParams(
            # All axes sequential: the fused-layer design carries state in VMEM
            # scratch across row blocks and layers.
            dimension_semantics=("arbitrary", "arbitrary", "arbitrary"),
            vmem_limit_bytes=_vmem_limit_bytes(n_pad, dp, tm, tk),
        ),
    )(a_p, h_p, w_p, b_p)

    return out[:N, :D]


def build_normalized_adjacency(src, dst, num_nodes):
    """dgl.to_bidirected + dgl.add_self_loop + GraphConv 'both' normalization,
    materialized as a dense [N, N] matrix (host-side, like create_graph())."""
    a = np.zeros((num_nodes, num_nodes), dtype=np.float32)
    a[src, dst] = 1.0
    a[dst, src] = 1.0            # bidirected (dedups parallel edges)
    np.fill_diagonal(a, 1.0)     # self loops
    deg = a.sum(axis=1)
    deg = np.clip(deg, 1.0, None)
    d_inv_sqrt = 1.0 / np.sqrt(deg)
    a_hat = (d_inv_sqrt[:, None] * a) * d_inv_sqrt[None, :]
    return jnp.asarray(a_hat)


class GCNPallas:
    """Forward-pass equivalent of the PyTorch/DGL GCN module."""

    def __init__(self, latent_dim, num_layers, src, dst, num_nodes, key):
        self.latent_dim = latent_dim
        self.num_layers = num_layers
        self.a_hat = build_normalized_adjacency(src, dst, num_nodes)
        # GraphConv default init: xavier_uniform weight, zero bias.
        limit = np.sqrt(6.0 / (latent_dim + latent_dim))
        ws, bs = [], []
        for _ in range(num_layers):
            key, wk = jax.random.split(key)
            ws.append(jax.random.uniform(
                wk, (latent_dim, latent_dim), dtype=jnp.float32,
                minval=-limit, maxval=limit))
            bs.append(jnp.zeros((latent_dim,), dtype=jnp.float32))
        self.w_stack = jnp.stack(ws)      # (L, D, D)
        self.b_stack = jnp.stack(bs)      # (L, D)

    def __call__(self, h):
        return gcn_forward(self.a_hat, h, self.w_stack, self.b_stack)


def gcn_reference(a_hat, h, w_stack, b_stack):
    """Pure-JAX reference with the same bf16-input / f32-accumulate precision
    as the kernel (same math as DGL GraphConv norm='both')."""
    a16 = a_hat.astype(jnp.bfloat16)
    x = h.astype(jnp.float32)
    for l in range(w_stack.shape[0]):
        ah = jnp.dot(a16, x.astype(jnp.bfloat16),
                     preferred_element_type=jnp.float32)
        x = jnp.dot(ah.astype(jnp.bfloat16), w_stack[l].astype(jnp.bfloat16),
                    preferred_element_type=jnp.float32) + b_stack[l][None, :]
    return x


if __name__ == "__main__":
    key = jax.random.PRNGKey(0)

    num_nodes = 16
    latent_dim = 32
    num_layers = 2

    # Small deterministic graph: a ring on 16 nodes.
    src = np.arange(num_nodes)
    dst = (np.arange(num_nodes) + 1) % num_nodes

    key, hkey, mkey = jax.random.split(key, 3)
    h = jax.random.normal(hkey, (num_nodes, latent_dim), dtype=jnp.float32)

    model = GCNPallas(latent_dim, num_layers, src, dst, num_nodes, mkey)

    out = jax.block_until_ready(model(h))

    ref = gcn_reference(model.a_hat, h, model.w_stack, model.b_stack)
    np.testing.assert_allclose(np.asarray(out), np.asarray(ref),
                               rtol=1e-3, atol=1e-3)

    print("KERNEL_OK")
</pallas_src>

<mosaic_0001>
module attributes {stable_mosaic.version = 11 : i64} {
  func.func @gcn_fused_kernel(%arg0: i32, %arg1: i32, %arg2: i32, %arg3: memref<128x128xbf16, #tpu.memory_space<vmem>>, %arg4: memref<128x128xbf16, #tpu.memory_space<vmem>>, %arg5: memref<1x128x128xbf16, #tpu.memory_space<vmem>>, %arg6: memref<1x1x128xf32, #tpu.memory_space<vmem>>, %arg7: memref<128x128xf32, #tpu.memory_space<vmem>>, %arg8: memref<128x128xf32, #tpu.memory_space<vmem>>, %arg9: memref<2x128x128xbf16, #tpu.memory_space<vmem>>) attributes {dimension_semantics = [#tpu.dimension_semantics<arbitrary>, #tpu.dimension_semantics<arbitrary>, #tpu.dimension_semantics<arbitrary>], iteration_bounds = array<i64: 2, 1, 1>, scalar_prefetch = 0 : i64, scratch_operands = 2 : i64, tpu.core_type = #tpu.core_type<tc>, window_params = [{transform_indices = @transform_0, window_bounds = array<i64: 128, 128>}, {pipeline_mode = #tpu.pipeline_mode<synchronous>, transform_indices = @transform_1, window_bounds = array<i64: 128, 128>}, {transform_indices = @transform_2, window_bounds = array<i64: 1, 128, 128>}, {transform_indices = @transform_3, window_bounds = array<i64: 1, 1, 128>}, {pipeline_mode = #tpu.pipeline_mode<synchronous>, transform_indices = @transform_4, window_bounds = array<i64: 128, 128>}]} {
    %c0_i32 = arith.constant 0 : i32
    %0 = arith.cmpi eq, %arg0, %c0_i32 : i32
    %c0_i32_0 = arith.constant 0 : i32
    %1 = arith.cmpi eq, %arg1, %c0_i32_0 : i32
    %2 = arith.andi %0, %1 : i1
    %c0_i32_1 = arith.constant 0 : i32
    %3 = arith.cmpi eq, %arg2, %c0_i32_1 : i32
    %4 = arith.andi %2, %3 : i1
    %5 = arith.extui %4 : i1 to i32
    %c0_i32_2 = arith.constant 0 : i32
    %6 = arith.cmpi ne, %5, %c0_i32_2 : i32
    scf.if %6 {
      %c0_17 = arith.constant 0 : index
      %c0_18 = arith.constant 0 : index
      %34 = vector.load %arg4[%c0_17, %c0_18] : memref<128x128xbf16, #tpu.memory_space<vmem>>, vector<128x128xbf16>
      %c0_19 = arith.constant 0 : index
      %c0_20 = arith.constant 0 : index
      %c0_21 = arith.constant 0 : index
      %35 = vector.load %arg9[%c0_19, %c0_20, %c0_21] : memref<2x128x128xbf16, #tpu.memory_space<vmem>>, vector<1x128x128xbf16>
      %36 = vector.shape_cast %35 : vector<1x128x128xbf16> to vector<128x128xbf16>
      %37 = vector.shape_cast %34 : vector<128x128xbf16> to vector<1x128x128xbf16>
      tpu.vector_store %arg9[%c0_19, %c0_20, %c0_21], %37 {strides = array<i32>} : memref<2x128x128xbf16, #tpu.memory_space<vmem>>, vector<1x128x128xbf16>,
    } else {
    }
    %c2_i32 = arith.constant 2 : i32
    %c0_i32_3 = arith.constant 0 : i32
    %7 = arith.cmpi eq, %c2_i32, %c0_i32_3 : i32
    %c1_i32 = arith.constant 1 : i32
    %8 = arith.select %7, %c1_i32, %c2_i32 : i32
    %9 = arith.remsi %arg0, %8 : i32
    %c0_i32_4 = arith.constant 0 : i32
    %10 = arith.cmpi ne, %9, %c0_i32_4 : i32
    %c0_i32_5 = arith.constant 0 : i32
    %11 = arith.cmpi slt, %9, %c0_i32_5 : i32
    %c0_i32_6 = arith.constant 0 : i32
    %12 = arith.cmpi slt, %8, %c0_i32_6 : i32
    %13 = arith.xori %11, %12 : i1
    %14 = arith.andi %13, %10 : i1
    %15 = arith.addi %9, %8 : i32
    %16 = arith.select %14, %15, %9 : i32
    %c0_i32_7 = arith.constant 0 : i32
    %17 = arith.cmpi eq, %arg2, %c0_i32_7 : i32
    %18 = arith.extui %17 : i1 to i32
    %c0_i32_8 = arith.constant 0 : i32
    %19 = arith.cmpi ne, %18, %c0_i32_8 : i32
    scf.if %19 {
      %cst_17 = arith.constant 0.000000e+00 : f32
      %34 = vector.broadcast %cst_17 : f32 to vector<128x128xf32>
      %c0_18 = arith.constant 0 : index
      %c0_19 = arith.constant 0 : index
      %35 = vector.load %arg8[%c0_18, %c0_19] : memref<128x128xf32, #tpu.memory_space<vmem>>, vector<128x128xf32>
      tpu.vector_store %arg8[%c0_18, %c0_19], %34 {strides = array<i32>} : memref<128x128xf32, #tpu.memory_space<vmem>>, vector<128x128xf32>,
    } else {
    }
    %c128_i32 = arith.constant 128 : i32
    %20 = arith.muli %arg2, %c128_i32 : i32
    %21 = tpu.assume_multiple %20, 128 : i32
    %22 = arith.index_cast %16 : i32 to index
    %23 = arith.index_cast %21 : i32 to index
    %c0 = arith.constant 0 : index
    %24 = vector.load %arg9[%22, %23, %c0] : memref<2x128x128xbf16, #tpu.memory_space<vmem>>, vector<1x128x128xbf16>
    %25 = vector.shape_cast %24 : vector<1x128x128xbf16> to vector<128x128xbf16>
    %c0_9 = arith.constant 0 : index
    %c0_10 = arith.constant 0 : index
    %26 = vector.load %arg8[%c0_9, %c0_10] : memref<128x128xf32, #tpu.memory_space<vmem>>, vector<128x128xf32>
    %c0_11 = arith.constant 0 : index
    %c0_12 = arith.constant 0 : index
    %27 = vector.load %arg3[%c0_11, %c0_12] : memref<128x128xbf16, #tpu.memory_space<vmem>>, vector<128x128xbf16>
    %cst = arith.constant dense<0.000000e+00> : vector<128x128xf32>
    %28 = tpu.matmul %27, %25, %cst {dimension_numbers = #tpu.dot_dimension_numbers<[1], [0], [0], [1], [0, 0, 1, 1], [], []>} : vector<128x128xbf16>, vector<128x128xbf16>, vector<128x128xf32> -> vector<128x128xf32>
    %29 = arith.addf %26, %28 : vector<128x128xf32>
    %c0_13 = arith.constant 0 : index
    %c0_14 = arith.constant 0 : index
    %30 = vector.load %arg8[%c0_13, %c0_14] : memref<128x128xf32, #tpu.memory_space<vmem>>, vector<128x128xf32>
    tpu.vector_store %arg8[%c0_13, %c0_14], %29 {strides = array<i32>} : memref<128x128xf32, #tpu.memory_space<vmem>>, vector<128x128xf32>,
    %c0_i32_15 = arith.constant 0 : i32
    %31 = arith.cmpi eq, %arg2, %c0_i32_15 : i32
    %32 = arith.extui %31 : i1 to i32
    %c0_i32_16 = arith.constant 0 : i32
    %33 = arith.cmpi ne, %32, %c0_i32_16 : i32
    scf.if %33 {
      %c0_17 = arith.constant 0 : index
      %c0_18 = arith.constant 0 : index
      %34 = vector.load %arg8[%c0_17, %c0_18] : memref<128x128xf32, #tpu.memory_space<vmem>>, vector<128x128xf32>
      %35 = arith.truncf %34 : vector<128x128xf32> to vector<128x128xbf16>
      %c0_19 = arith.constant 0 : index
      %c0_20 = arith.constant 0 : index
      %c0_21 = arith.constant 0 : index
      %36 = vector.load %arg5[%c0_19, %c0_20, %c0_21] : memref<1x128x128xbf16, #tpu.memory_space<vmem>>, vector<1x128x128xbf16>
      %37 = vector.shape_cast %36 : vector<1x128x128xbf16> to vector<128x128xbf16>
      %cst_22 = arith.constant dense<0.000000e+00> : vector<128x128xf32>
      %38 = tpu.matmul %35, %37, %cst_22 {dimension_numbers = #tpu.dot_dimension_numbers<[1], [0], [0], [1], [0, 0, 1, 1], [], []>} : vector<128x128xbf16>, vector<128x128xbf16>, vector<128x128xf32> -> vector<128x128xf32>
      %c0_23 = arith.constant 0 : index
      %c0_24 = arith.constant 0 : index
      %c0_25 = arith.constant 0 : index
      %39 = vector.load %arg6[%c0_23, %c0_24, %c0_25] : memref<1x1x128xf32, #tpu.memory_space<vmem>>, vector<1x1x128xf32>
      %40 = vector.shape_cast %39 : vector<1x1x128xf32> to vector<1x128xf32>
      %41 = vector.broadcast %40 : vector<1x128xf32> to vector<128x128xf32>
      %42 = arith.addf %38, %41 : vector<128x128xf32>
      %c128_i32_26 = arith.constant 128 : i32
      %43 = arith.muli %arg1, %c128_i32_26 : i32
      %44 = tpu.assume_multiple %43, 128 : i32
      %c1_i32_27 = arith.constant 1 : i32
      %45 = arith.cmpi slt, %arg0, %c1_i32_27 : i32
      %46 = arith.extui %45 : i1 to i32
      %c0_i32_28 = arith.constant 0 : i32
      %47 = arith.cmpi ne, %46, %c0_i32_28 : i32
      scf.if %47 {
        %51 = arith.truncf %42 : vector<128x128xf32> to vector<128x128xbf16>
        %c1_i32_31 = arith.constant 1 : i32
        %52 = arith.subi %c1_i32_31, %16 : i32
        %53 = arith.index_cast %52 : i32 to index
        %54 = arith.index_cast %44 : i32 to index
        %c0_32 = arith.constant 0 : index
        %55 = vector.load %arg9[%53, %54, %c0_32] : memref<2x128x128xbf16, #tpu.memory_space<vmem>>, vector<1x128x128xbf16>
        %56 = vector.shape_cast %55 : vector<1x128x128xbf16> to vector<128x128xbf16>
        %57 = vector.shape_cast %51 : vector<128x128xbf16> to vector<1x128x128xbf16>
        tpu.vector_store %arg9[%53, %54, %c0_32], %57 {strides = array<i32>} : memref<2x128x128xbf16, #tpu.memory_space<vmem>>, vector<1x128x128xbf16>,
      } else {
      }
      %c1_i32_29 = arith.constant 1 : i32
      %48 = arith.cmpi eq, %arg0, %c1_i32_29 : i32
      %49 = arith.extui %48 : i1 to i32
      %c0_i32_30 = arith.constant 0 : i32
      %50 = arith.cmpi ne, %49, %c0_i32_30 : i32
      scf.if %50 {
        %51 = arith.index_cast %44 : i32 to index
        %c0_31 = arith.constant 0 : index
        %52 = vector.load %arg7[%51, %c0_31] : memref<128x128xf32, #tpu.memory_space<vmem>>, vector<128x128xf32>
        tpu.vector_store %arg7[%51, %c0_31], %42 {strides = array<i32>} : memref<128x128xf32, #tpu.memory_space<vmem>>, vector<128x128xf32>,
      } else {
      }
    } else {
    }
    return
  }
  func.func @transform_0(%arg0: i32, %arg1: i32, %arg2: i32) -> (i32, i32) {
    %c0_i32 = arith.constant 0 : i32
    return %arg1, %arg2 : i32, i32
  }
  func.func @transform_1(%arg0: i32, %arg1: i32, %arg2: i32) -> (i32, i32) {
    %c0_i32 = arith.constant 0 : i32
    %c0_i32_0 = arith.constant 0 : i32
    %c0_i32_1 = arith.constant 0 : i32
    return %c0_i32, %c0_i32_0 : i32, i32
  }
  func.func @transform_2(%arg0: i32, %arg1: i32, %arg2: i32) -> (i32, i32, i32) {
    %c0_i32 = arith.constant 0 : i32
    %c0_i32_0 = arith.constant 0 : i32
    %c0_i32_1 = arith.constant 0 : i32
    return %arg0, %c0_i32, %c0_i32_0 : i32, i32, i32
  }
  func.func @transform_3(%arg0: i32, %arg1: i32, %arg2: i32) -> (i32, i32, i32) {
    %c0_i32 = arith.constant 0 : i32
    %c0_i32_0 = arith.constant 0 : i32
    %c0_i32_1 = arith.constant 0 : i32
    return %arg0, %c0_i32, %c0_i32_0 : i32, i32, i32
  }
  func.func @transform_4(%arg0: i32, %arg1: i32, %arg2: i32) -> (i32, i32) {
    %c0_i32 = arith.constant 0 : i32
    %c0_i32_0 = arith.constant 0 : i32
    %c0_i32_1 = arith.constant 0 : i32
    return %c0_i32, %c0_i32_0 : i32, i32
  }
}

</mosaic_0001>

<llo_original>
// kernel: tpu_custom_call.1
$region0: #{tpu_custom_call.1}
  #allocation0 [shape = 'u32[]', space=smem, size = 0x4, offset = 0x4, fixed_abs, tag = 'smem constant byte address 0x4 - core index']
  #allocation1 [shape = 'u32[144,128]{1,0:T(1,128)}', space=vmem, size = 0x12000, scoped, tag = 'internal scratch']
  #allocation2 [shape = 'f32[128,128]{1,0:T(8,128)}', space=vmem, size = 0x10000, scoped, tag = 'scratch operand']
  #allocation3 [shape = 'bf16[2,128,128]{2,1,0:T(16,128)(2,1)}', space=vmem, size = 0x10000, scoped, tag = 'scratch operand']
  %s0 = inlined_call_operand.hbm [shape: bf16[128,128], index: 0, kind: input, shape index: {}]
  %s1 = inlined_call_operand.hbm [shape: bf16[128,128], index: 1, kind: input, shape index: {}]
  %s2 = inlined_call_operand.hbm [shape: bf16[2,128,128], index: 2, kind: input, shape index: {}]
  %s3 = inlined_call_operand.vmem [shape: f32[2,1,128], index: 3, kind: input, shape index: {}]
  %s4 = inlined_call_operand.hbm [shape: f32[128,128], index: 4, kind: output, shape index: {}]
  %s5 = sld [smem:[#allocation0]]
  $region81: #{tpu_custom_call.1} parent=0
    _
  %s7 = ssub.s32 1, %s5
  %s8 = scalar_select 0, %s7, %s5
  $region1: #{tpu_custom_call.1} parent=0
    #allocation4 [shape = 'u8[32768]{0}', space=vmem, size = 0x8000, scoped, tag = 'input window, operand 0, single buffered']
    #allocation5 [shape = 's32[2]{0}', space=sflag, size = 0x8, scoped, tag = 'scoped memory for tpu_custom_call.1']
    #allocation6 [shape = 's32[2]{0}', space=sflag, size = 0x8, scoped, tag = 'scoped memory for tpu_custom_call.1']
    #allocation7 [shape = 'u8[32768]{0}', space=vmem, size = 0x8000, scoped, tag = 'input window, operand 1, single buffered']
    #allocation8 [shape = 's32[1]{0}', space=sflag, size = 0x4, scoped, tag = 'scoped memory for tpu_custom_call.1']
    #allocation9 [shape = 'u8[65536]{0}', space=vmem, size = 0x10000, scoped, tag = 'input window, operand 2']
    #allocation10 [shape = 'u8[65536]{0}', space=vmem, size = 0x10000, scoped, tag = 'output window, operand 0, single buffered']
    %9 = vsyncpa [#allocation5], 0
    %10 = vsyncpa [#allocation8], 0
    %11 = vsyncpa [#allocation6], 0
    loop: start=0, step=1, limit=4
    $region2: #{tpu_custom_call.1} parent=1 // loop_pre_header
      _
    $region3: #{tpu_custom_call.1} parent=1 // loop_header
      %s13 = sphi 0, %s17
      %p14 = scmp.ge.s32.totalorder %s13, 4
      %s20 = sphi 0, %s39
      %s21 = sphi 0, %s35
      %s22 = sphi 0, %s31
      %s23 = sphi 0, %s20
      %s24 = sphi 0, %s21
      %s25 = sphi 0, %s22
      %s26 = sphi 0, %s23
      %s27 = sphi 0, %s24
      %s28 = sphi 0, %s25
      %s44 = sphi 0, %s46
      %s47 = sphi 0, %s44
      %s48 = sphi 0, %s47
      %s64 = sphi 0, %s48
      %s68 = sphi 0, %s68
      %s70 = sphi 0, %s68
      %s71 = sphi 0, %s70
      %s85 = sphi 0, %s71
      %s91 = sphi 0, %s93
      %s94 = sphi 0, %s91
      %s95 = sphi 0, %s94
      %s111 = sphi 0, %s95
      %s117 = sphi 0, %s119
      %s120 = sphi 0, %s117
      %s121 = sphi 0, %s120
      %s137 = sphi 0, %s121
      %s141 = sphi 0, %s141
      %s143 = sphi 0, %s141
      %s144 = sphi 0, %s143
      %s158 = sphi 0, %s144
    $region4: #{tpu_custom_call.1} parent=1 // loop_header_branch
      %16 = sbr.rel (%p14) target = $region8
    $region5: #{tpu_custom_call.1} parent=1 // loop_body
      %s18 = ssub.s32 %s13, 1
      %s19 = ssub.s32 %s13, 2
      %s29 = sadd.s32 1, %s22
      %p30 = scmp.ge.s32.totalorder %s29, 1
      %s31 = scalar_select %p30, 0, %s29
      %s32 = sadd.s32 1, %s21
      %s33 = scalar_select %p30, %s32, %s21
      %p34 = scmp.ge.s32.totalorder %s33, 1
      %s35 = scalar_select %p34, 0, %s33
      %s36 = sadd.s32 1, %s20
      %s37 = scalar_select %p34, %s36, %s20
      %p38 = scmp.ge.s32.totalorder %s37, 2
      %s39 = scalar_select %p38, 0, %s37
      %s40 = ssub.s32 %s21, %s35
      %s41 = ssub.s32 %s22, %s31
      %s42 = sor.u32 %s40, %s41
      %p43 = scmp.eq.s32.totalorder %s42, 0
      %s45 = sadd.s32 %s44, 1
      %s46 = scalar_select %p43, %s44, %s45
      %p49 = pneg %p43
      %p50 = scmp.eq.s32.totalorder %s13, 1
      %p51 = por %p49, %p50
      %p52 = scmp.ne.s32.totalorder %s44, %s47
      %p53 = scmp.eq.s32.totalorder %s13, 0
      %p54 = por %p52, %p53
      %p55 = scmp.ne.s32.totalorder %s44, %s47
      %p56 = scmp.eq.s32.totalorder %s18, 1
      %p57 = por %p55, %p56
      %p58 = scmp.ne.s32.totalorder %s47, %s48
      %p59 = scmp.eq.s32.totalorder %s18, 0
      %p60 = por %p58, %p59
      %p61 = scmp.ne.s32.totalorder %s47, %s48
      %p62 = scmp.eq.s32.totalorder %s19, 1
      %p63 = por %p61, %p62
      %p65 = scmp.ne.s32.totalorder %s48, %s64
      %p66 = scmp.eq.s32.totalorder %s19, 0
      %p67 = por %p65, %p66
      %s69 = sadd.s32 %s68, 1
      %p72 = scmp.eq.s32.totalorder %s13, 1
      %p73 = scmp.ne.s32.totalorder %s68, %s70
      %p74 = scmp.eq.s32.totalorder %s13, 0
      %p75 = por %p73, %p74
      %p76 = scmp.ne.s32.totalorder %s68, %s70
      %p77 = scmp.eq.s32.totalorder %s18, 1
      %p78 = por %p76, %p77
      %p79 = scmp.ne.s32.totalorder %s70, %s71
      %p80 = scmp.eq.s32.totalorder %s18, 0
      %p81 = por %p79, %p80
      %p82 = scmp.ne.s32.totalorder %s70, %s71
      %p83 = scmp.eq.s32.totalorder %s19, 1
      %p84 = por %p82, %p83
      %p86 = scmp.ne.s32.totalorder %s71, %s85
      %p87 = scmp.eq.s32.totalorder %s19, 0
      %p88 = por %p86, %p87
      %s89 = ssub.s32 %s20, %s39
      %p90 = scmp.eq.s32.totalorder %s89, 0
      %s92 = sadd.s32 %s91, 1
      %s93 = scalar_select %p90, %s91, %s92
      %p96 = pneg %p90
      %p97 = scmp.eq.s32.totalorder %s13, 1
      %p98 = por %p96, %p97
      %p99 = scmp.ne.s32.totalorder %s91, %s94
      %p100 = scmp.eq.s32.totalorder %s13, 0
      %p101 = por %p99, %p100
      %p102 = scmp.ne.s32.totalorder %s91, %s94
      %p103 = scmp.eq.s32.totalorder %s18, 1
      %p104 = por %p102, %p103
      %p105 = scmp.ne.s32.totalorder %s94, %s95
      %p106 = scmp.eq.s32.totalorder %s18, 0
      %p107 = por %p105, %p106
      %p108 = scmp.ne.s32.totalorder %s94, %s95
      %p109 = scmp.eq.s32.totalorder %s19, 1
      %p110 = por %p108, %p109
      %p112 = scmp.ne.s32.totalorder %s95, %s111
      %p113 = scmp.eq.s32.totalorder %s19, 0
      %p114 = por %p112, %p113
      %s115 = ssub.s32 %s20, %s39
      %p116 = scmp.eq.s32.totalorder %s115, 0
      %s118 = sadd.s32 %s117, 1
      %s119 = scalar_select %p116, %s117, %s118
      %p122 = pneg %p116
      %p123 = scmp.eq.s32.totalorder %s13, 1
      %p124 = por %p122, %p123
      %p125 = scmp.ne.s32.totalorder %s117, %s120
      %p126 = scmp.eq.s32.totalorder %s13, 0
      %p127 = por %p125, %p126
      %p128 = scmp.ne.s32.totalorder %s117, %s120
      %p129 = scmp.eq.s32.totalorder %s18, 1
      %p130 = por %p128, %p129
      %p131 = scmp.ne.s32.totalorder %s120, %s121
      %p132 = scmp.eq.s32.totalorder %s18, 0
      %p133 = por %p131, %p132
      %p134 = scmp.ne.s32.totalorder %s120, %s121
      %p135 = scmp.eq.s32.totalorder %s19, 1
      %p136 = por %p134, %p135
      %p138 = scmp.ne.s32.totalorder %s121, %s137
      %p139 = scmp.eq.s32.totalorder %s19, 0
      %p140 = por %p138, %p139
      %s142 = sadd.s32 %s141, 1
      %p145 = scmp.eq.s32.totalorder %s13, 1
      %p146 = scmp.ne.s32.totalorder %s141, %s143
      %p147 = scmp.eq.s32.totalorder %s13, 0
      %p148 = por %p146, %p147
      %p149 = scmp.ne.s32.totalorder %s141, %s143
      %p150 = scmp.eq.s32.totalorder %s18, 1
      %p151 = por %p149, %p150
      %p152 = scmp.ne.s32.totalorder %s143, %s144
      %p153 = scmp.eq.s32.totalorder %s18, 0
      %p154 = por %p152, %p153
      %p155 = scmp.ne.s32.totalorder %s143, %s144
      %p156 = scmp.eq.s32.totalorder %s19, 1
      %p157 = por %p155, %p156
      %p159 = scmp.ne.s32.totalorder %s144, %s158
      %p160 = scmp.eq.s32.totalorder %s19, 0
      %p161 = por %p159, %p160
      %p162 = scmp.le.s32.totalorder 1, %s13
      %p163 = scmp.lt.s32.totalorder %s13, 3
      %p164 = pnand %p162, %p163
      %p165 = pneg %p164
      // Predicated region
      $region9: #{tpu_custom_call.1} parent=5 // pred_check
        _
      $region10: #{tpu_custom_call.1} parent=5 // pred_check_branch
        %167 = sbr.rel (%p164) target = $region12
      $region11: #{tpu_custom_call.1} parent=5 // pred_region
        %s168 = ssub.s32 %s13, 1
        // Predicated region
        $region13: #{tpu_custom_call.1} parent=11 // pred_check
          %p169 = pneg %p60
        $region14: #{tpu_custom_call.1} parent=11 // pred_check_branch
          %171 = sbr.rel (%p169) target = $region16
        $region15: #{tpu_custom_call.1} parent=11 // pred_region
          %s172 = smul.u32 16, %s24
          %s174 = ssub.s32 1024, 1024
          %175 = vsyncadd [#allocation5], %s174
          %s176 = sadd.s32 %s25, %s172
          %s177 = smul.addr %s176, 64
          %s178 = scalar_lea.hbm %s0, %s177
          %s179 = sshll.u32 [#allocation4], 4
          %s180 = int_to_ptr.vmem [resolvable:$true] %s179
          %185 = dma.hbm_to_vmem [thread:$0]  %s178, 1024, %s180, [#allocation5], 64, 64, 4
        $region16: #{tpu_custom_call.1} parent=11 // pred_fallthru
          _
        // Predicated region
        $region17: #{tpu_custom_call.1} parent=11 // pred_check
          %p186 = pneg %p81
        $region18: #{tpu_custom_call.1} parent=11 // pred_check_branch
          %188 = sbr.rel (%p186) target = $region20
        $region19: #{tpu_custom_call.1} parent=11 // pred_region
          %s190 = ssub.s32 1024, 1024
          %191 = vsyncadd [#allocation8], %s190
          %s192 = sshll.u32 [#allocation7], 4
          %s193 = int_to_ptr.vmem [resolvable:$true] %s192
          %198 = dma.hbm_to_vmem [thread:$0]  %s1, 1024, %s193, [#allocation8], 64, 64, 4
        $region20: #{tpu_custom_call.1} parent=11 // pred_fallthru
          _
      $region12: #{tpu_custom_call.1} parent=5 // pred_fallthru
        _
      %p199 = scmp.lt.s32.totalorder %s13, 2
      // Predicated region
      $region21: #{tpu_custom_call.1} parent=5 // pred_check
        %p200 = pneg %p199
      $region22: #{tpu_custom_call.1} parent=5 // pred_check_branch
        %202 = sbr.rel (%p200) target = $region24
      $region23: #{tpu_custom_call.1} parent=5 // pred_region
        // Predicated region
        $region25: #{tpu_custom_call.1} parent=23 // pred_check
          %p203 = pneg %p101
        $region26: #{tpu_custom_call.1} parent=23 // pred_check_branch
          %205 = sbr.rel (%p203) target = $region28
        $region27: #{tpu_custom_call.1} parent=23 // pred_region
          %s206 = sand.u32 %s13, 1
          %s207 = scalar_lea.sflag [#allocation5], %s206
          %s208 = sand.u32 %s91, 1
          %s209 = smul.addr %s208, 64
          %s210 = scalar_lea.vmem [#allocation9], %s209
          %s212 = ssub.s32 1024, 1024
          %213 = vsyncadd %s207, %s212
          %s214 = smul.addr %s20, 16
          %s215 = smul.addr %s214, 64
          %s216 = scalar_lea.hbm %s2, %s215
          %s217 = sshll.u32 %s210, 4
          %s218 = int_to_ptr.vmem [resolvable:$true] %s217
          %223 = dma.hbm_to_vmem [thread:$0]  %s216, 1024, %s218, %s207, 64, 64, 4
        $region28: #{tpu_custom_call.1} parent=23 // pred_fallthru
          _
        // Predicated region
        $region29: #{tpu_custom_call.1} parent=23 // pred_check
          %p224 = pneg %p127
        $region30: #{tpu_custom_call.1} parent=23 // pred_check_branch
          %226 = sbr.rel (%p224) target = $region32
        $region31: #{tpu_custom_call.1} parent=23 // pred_region
          %p227 = scmp.lt.s32.totalorder %s20, 1
          %s228 = scalar_select %p227, %s20, 1
          %s229 = scalar_lea.vmem %s3, %s228
        $region32: #{tpu_custom_call.1} parent=23 // pred_fallthru
          _
      $region24: #{tpu_custom_call.1} parent=5 // pred_fallthru
        _
      %p230 = scmp.le.s32.totalorder 1, %s13
      %p231 = scmp.lt.s32.totalorder %s13, 3
      %p232 = pnand %p230, %p231
      %p233 = pneg %p232
      // Predicated region
      $region33: #{tpu_custom_call.1} parent=5 // pred_check
        _
      $region34: #{tpu_custom_call.1} parent=5 // pred_check_branch
        %235 = sbr.rel (%p232) target = $region36
      $region35: #{tpu_custom_call.1} parent=5 // pred_region
        %s236 = ssub.s32 %s13, 1
        // Predicated region
        $region37: #{tpu_custom_call.1} parent=35 // pred_check
          %p237 = pneg %p60
        $region38: #{tpu_custom_call.1} parent=35 // pred_check_branch
          %239 = sbr.rel (%p237) target = $region40
        $region39: #{tpu_custom_call.1} parent=35 // pred_region
          %240 = dma.done [#allocation5], 1024
        $region40: #{tpu_custom_call.1} parent=35 // pred_fallthru
          _
        // Predicated region
        $region41: #{tpu_custom_call.1} parent=35 // pred_check
          %p241 = pneg %p81
        $region42: #{tpu_custom_call.1} parent=35 // pred_check_branch
          %243 = sbr.rel (%p241) target = $region44
        $region43: #{tpu_custom_call.1} parent=35 // pred_region
          %244 = dma.done [#allocation8], 1024
        $region44: #{tpu_custom_call.1} parent=35 // pred_fallthru
          _
        %s245 = sand.u32 %s18, 1
        %s246 = scalar_lea.sflag [#allocation5], %s245
        %s247 = sand.u32 %s94, 1
        %s248 = smul.addr %s247, 64
        %s249 = scalar_lea.vmem [#allocation9], %s248
        // Predicated region
        $region45: #{tpu_custom_call.1} parent=35 // pred_check
          %p250 = pneg %p107
        $region46: #{tpu_custom_call.1} parent=35 // pred_check_branch
          %252 = sbr.rel (%p250) target = $region48
        $region47: #{tpu_custom_call.1} parent=35 // pred_region
          %253 = dma.done %s246, 1024
        $region48: #{tpu_custom_call.1} parent=35 // pred_fallthru
          _
        %p254 = pneg %p60
        %p255 = pneg %p57
        %p256 = pneg %p81
        %p257 = pneg %p78
        %s258 = sand.u32 %s18, 1
        %s259 = scalar_lea.sflag [#allocation5], %s258
        %s260 = sand.u32 %s94, 1
        %s261 = smul.addr %s260, 64
        %s262 = scalar_lea.vmem [#allocation9], %s261
        %p263 = pneg %p107
        %p264 = pneg %p104
        %p265 = scmp.lt.s32.totalorder %s23, 1
        %s266 = scalar_select %p265, %s23, 1
        %s267 = scalar_lea.vmem %s3, %s266
        %p268 = pneg %p133
        %p269 = pneg %p130
        %p270 = pneg %p154
        %p271 = pneg %p151
        %s272 = smul.u32 16, %s24
        %p273 = scmp.lt.s32.totalorder %s23, 1
        %s274 = scalar_select %p273, %s23, 1
        %s275 = scalar_lea.vmem %s3, %s274
        %p277 = scmp.eq.s32.totalorder %s23, 0
        %p278 = scmp.eq.s32.totalorder %s24, 0
        %p279 = pnand %p277, %p278
        %p280 = pneg %p279
        %p281 = scmp.eq.s32.totalorder %s25, 0
        %p282 = pnand %p280, %p281
        %p283 = pneg %p282
        // Predicated region
        $region49: #{tpu_custom_call.1} parent=35 // pred_check
          _
        $region50: #{tpu_custom_call.1} parent=35 // pred_check_branch
          %285 = sbr.rel (%p282) target = $region52
        $region51: #{tpu_custom_call.1} parent=35 // pred_region
          %v286 = vld [vmem:[#allocation7] sm:$0xf]
          %v287 = vld [vmem:[#allocation7 + $0x4] sm:$0xf]
          %v288 = vld [vmem:[#allocation7 + $0x8] sm:$0xf]
          %v289 = vld [vmem:[#allocation7 + $0xc] sm:$0xf]
          %v290 = vld [vmem:[#allocation7 + $0x10] sm:$0xf]
          %v291 = vld [vmem:[#allocation7 + $0x14] sm:$0xf]
          %v292 = vld [vmem:[#allocation7 + $0x18] sm:$0xf]
          %v293 = vld [vmem:[#allocation7 + $0x1c] sm:$0xf]
          %v294 = vld [vmem:[#allocation7 + $0x20] sm:$0xf]
          %v295 = vld [vmem:[#allocation7 + $0x24] sm:$0xf]
          %v296 = vld [vmem:[#allocation7 + $0x28] sm:$0xf]
          %v297 = vld [vmem:[#allocation7 + $0x2c] sm:$0xf]
          %v298 = vld [vmem:[#allocation7 + $0x30] sm:$0xf]
          %v299 = vld [vmem:[#allocation7 + $0x34] sm:$0xf]
          %v300 = vld [vmem:[#allocation7 + $0x38] sm:$0xf]
          %v301 = vld [vmem:[#allocation7 + $0x3c] sm:$0xf]
          %v318 = vunpack.c.l.b16 %v286
          %v319 = vunpack.c.l.b16 %v287
          %v320 = vunpack.c.l.b16 %v288
          %v321 = vunpack.c.l.b16 %v289
          %v322 = vunpack.c.l.b16 %v290
          %v323 = vunpack.c.l.b16 %v291
          %v324 = vunpack.c.l.b16 %v292
          %v325 = vunpack.c.l.b16 %v293
          %v326 = vunpack.c.l.b16 %v294
          %v327 = vunpack.c.l.b16 %v295
          %v328 = vunpack.c.l.b16 %v296
          %v329 = vunpack.c.l.b16 %v297
          %v330 = vunpack.c.l.b16 %v298
          %v331 = vunpack.c.l.b16 %v299
          %v332 = vunpack.c.l.b16 %v300
          %v333 = vunpack.c.l.b16 %v301
          %v334 = vpack.c.b16 %v319, %v318
          %v335 = vpack.c.b16 %v321, %v320
          %v336 = vpack.c.b16 %v323, %v322
          %v337 = vpack.c.b16 %v325, %v324
          %v338 = vpack.c.b16 %v327, %v326
          %v339 = vpack.c.b16 %v329, %v328
          %v340 = vpack.c.b16 %v331, %v330
          %v341 = vpack.c.b16 %v333, %v332
          %350 = vst [vmem:[#allocation3] sm:$0xff] %v334
          %351 = vst [vmem:[#allocation3 + $0x8] sm:$0xff] %v335
          %352 = vst [vmem:[#allocation3 + $0x10] sm:$0xff] %v336
          %353 = vst [vmem:[#allocation3 + $0x18] sm:$0xff] %v337
          %354 = vst [vmem:[#allocation3 + $0x20] sm:$0xff] %v338
          %355 = vst [vmem:[#allocation3 + $0x28] sm:$0xff] %v339
          %356 = vst [vmem:[#allocation3 + $0x30] sm:$0xff] %v340
          %357 = vst [vmem:[#allocation3 + $0x38] sm:$0xff] %v341
        $region52: #{tpu_custom_call.1} parent=35 // pred_fallthru
          _
        %p358 = scmp.lt.s32.totalorder %s23, 0
        %s359 = ssub.s32 0, %s23
        %s360 = scalar_select %p358, %s359, %s23
        %s361 = sand.u32 %s360, 1
        %s362 = ssub.s32 0, %s361
        %s363 = scalar_select %p358, %s362, %s361
        %p364 = scmp.ne.s32.totalorder %s363, 0
        %p365 = scmp.lt.s32.totalorder %s363, 0
        %p366 = pnand %p365, %p364
        %p367 = pneg %p366
        %s368 = sadd.s32 %s363, 2
        %s369 = scalar_select %p367, %s368, %s363
        // Predicated region
        $region53: #{tpu_custom_call.1} parent=35 // pred_check
          %p370 = pneg %p281
        $region54: #{tpu_custom_call.1} parent=35 // pred_check_branch
          %372 = sbr.rel (%p370) target = $region56
        $region55: #{tpu_custom_call.1} parent=35 // pred_region
          %373 = vst [vmem:[#allocation2] sm:$0xff] 0.0
          %374 = vst [vmem:[#allocation2 + $0x8] sm:$0xff] 0.0
          %375 = vst [vmem:[#allocation2 + $0x10] sm:$0xff] 0.0
          %376 = vst [vmem:[#allocation2 + $0x18] sm:$0xff] 0.0
          %377 = vst [vmem:[#allocation2 + $0x20] sm:$0xff] 0.0
          %378 = vst [vmem:[#allocation2 + $0x28] sm:$0xff] 0.0
          %379 = vst [vmem:[#allocation2 + $0x30] sm:$0xff] 0.0
          %380 = vst [vmem:[#allocation2 + $0x38] sm:$0xff] 0.0
          %381 = vst [vmem:[#allocation2 + $0x40] sm:$0xff] 0.0
          %382 = vst [vmem:[#allocation2 + $0x48] sm:$0xff] 0.0
          %383 = vst [vmem:[#allocation2 + $0x50] sm:$0xff] 0.0
          %384 = vst [vmem:[#allocation2 + $0x58] sm:$0xff] 0.0
          %385 = vst [vmem:[#allocation2 + $0x60] sm:$0xff] 0.0
          %386 = vst [vmem:[#allocation2 + $0x68] sm:$0xff] 0.0
          %387 = vst [vmem:[#allocation2 + $0x70] sm:$0xff] 0.0
          %388 = vst [vmem:[#allocation2 + $0x78] sm:$0xff] 0.0
        $region56: #{tpu_custom_call.1} parent=35 // pred_fallthru
          _
        %s389 = smul.u32 %s25, 128
        %s390 = sshra.s32 %s389, 4
        %s391 = sand.u32 %s389, 15
        %s392 = smul.u32 %s369, 8
        %s393 = sadd.s32 %s390, %s392
        %s394 = smul.addr %s393, 8
        %s395 = scalar_lea.vmem [#allocation3], %s394
        %v396 = vld [vmem:[%s395] sm:$0xff]
        %v397 = vld [vmem:[%s395 + $0x8] sm:$0xff]
        %v398 = vld [vmem:[%s395 + $0x10] sm:$0xff]
        %v399 = vld [vmem:[%s395 + $0x18] sm:$0xff]
        %v400 = vld [vmem:[%s395 + $0x20] sm:$0xff]
        %v401 = vld [vmem:[%s395 + $0x28] sm:$0xff]
        %v402 = vld [vmem:[%s395 + $0x30] sm:$0xff]
        %v403 = vld [vmem:[%s395 + $0x38] sm:$0xff]
        %v404 = vld [vmem:[#allocation2] sm:$0xff]
        %v405 = vld [vmem:[#allocation2 + $0x8] sm:$0xff]
        %v406 = vld [vmem:[#allocation2 + $0x10] sm:$0xff]
        %v407 = vld [vmem:[#allocation2 + $0x18] sm:$0xff]
        %v408 = vld [vmem:[#allocation2 + $0x20] sm:$0xff]
        %v409 = vld [vmem:[#allocation2 + $0x28] sm:$0xff]
        %v410 = vld [vmem:[#allocation2 + $0x30] sm:$0xff]
        %v411 = vld [vmem:[#allocation2 + $0x38] sm:$0xff]
        %v412 = vld [vmem:[#allocation2 + $0x40] sm:$0xff]
        %v413 = vld [vmem:[#allocation2 + $0x48] sm:$0xff]
        %v414 = vld [vmem:[#allocation2 + $0x50] sm:$0xff]
        %v415 = vld [vmem:[#allocation2 + $0x58] sm:$0xff]
        %v416 = vld [vmem:[#allocation2 + $0x60] sm:$0xff]
        %v417 = vld [vmem:[#allocation2 + $0x68] sm:$0xff]
        %v418 = vld [vmem:[#allocation2 + $0x70] sm:$0xff]
        %v419 = vld [vmem:[#allocation2 + $0x78] sm:$0xff]
        %v420 = vld [vmem:[#allocation4] sm:$0xf]
        %v421 = vld [vmem:[#allocation4 + $0x4] sm:$0xf]
        %v422 = vld [vmem:[#allocation4 + $0x8] sm:$0xf]
        %v423 = vld [vmem:[#allocation4 + $0xc] sm:$0xf]
        %v424 = vld [vmem:[#allocation4 + $0x10] sm:$0xf]
        %v425 = vld [vmem:[#allocation4 + $0x14] sm:$0xf]
        %v426 = vld [vmem:[#allocation4 + $0x18] sm:$0xf]
        %v427 = vld [vmem:[#allocation4 + $0x1c] sm:$0xf]
        %v428 = vld [vmem:[#allocation4 + $0x20] sm:$0xf]
        %v429 = vld [vmem:[#allocation4 + $0x24] sm:$0xf]
        %v430 = vld [vmem:[#allocation4 + $0x28] sm:$0xf]
        %v431 = vld [vmem:[#allocation4 + $0x2c] sm:$0xf]
        %v432 = vld [vmem:[#allocation4 + $0x30] sm:$0xf]
        %v433 = vld [vmem:[#allocation4 + $0x34] sm:$0xf]
        %v434 = vld [vmem:[#allocation4 + $0x38] sm:$0xf]
        %v435 = vld [vmem:[#allocation4 + $0x3c] sm:$0xf]
        %v452 = vunpack.c.l.b16 %v420
        %v453 = vunpack.c.l.b16 %v421
        %v454 = vunpack.c.l.b16 %v422
        %v455 = vunpack.c.l.b16 %v423
        %v456 = vunpack.c.l.b16 %v424
        %v457 = vunpack.c.l.b16 %v425
        %v458 = vunpack.c.l.b16 %v426
        %v459 = vunpack.c.l.b16 %v427
        %v460 = vunpack.c.l.b16 %v428
        %v461 = vunpack.c.l.b16 %v429
        %v462 = vunpack.c.l.b16 %v430
        %v463 = vunpack.c.l.b16 %v431
        %v464 = vunpack.c.l.b16 %v432
        %v465 = vunpack.c.l.b16 %v433
        %v466 = vunpack.c.l.b16 %v434
        %v467 = vunpack.c.l.b16 %v435
        %v468 = vpack.c.b16 %v453, %v452
        %v469 = vpack.c.b16 %v455, %v454
        %v470 = vpack.c.b16 %v457, %v456
        %v471 = vpack.c.b16 %v459, %v458
        %v472 = vpack.c.b16 %v461, %v460
        %v473 = vpack.c.b16 %v463, %v462
        %v474 = vpack.c.b16 %v465, %v464
        %v475 = vpack.c.b16 %v467, %v466
        %484 = vmatprep.subr.bf16.mxu0 0
        %485 = vmatpush1.bf16.msra.mxu0 %v396
        %486 = vmatprep.subr.bf16.mxu0 0
        %487 = vmatpush1.bf16.msra.mxu0 %v397
        %488 = vmatprep.subr.bf16.mxu0 0
        %489 = vmatpush1.bf16.msra.mxu0 %v398
        %490 = vmatprep.subr.bf16.mxu0 0
        %491 = vmatpush1.bf16.msra.mxu0 %v399
        %492 = vmatprep.subr.bf16.mxu0 0
        %493 = vmatpush1.bf16.msra.mxu0 %v400
        %494 = vmatprep.subr.bf16.mxu0 0
        %495 = vmatpush1.bf16.msra.mxu0 %v401
        %496 = vmatprep.subr.bf16.mxu0 0
        %497 = vmatpush1.bf16.msra.mxu0 %v402
        %498 = vmatprep.subr.bf16.mxu0 0
        %499 = vmatpush1.bf16.msra.mxu0 %v403
        %500 = vmatprep.subr.bf16.mxu0 0
        %501 = vmatpush1.bf16.msra.mxu0 0
        %502 = vmatprep.subr.bf16.mxu0 0
        %503 = vmatpush1.bf16.msra.mxu0 0
        %504 = vmatprep.subr.bf16.mxu0 0
        %505 = vmatpush1.bf16.msra.mxu0 0
        %506 = vmatprep.subr.bf16.mxu0 0
        %507 = vmatpush1.bf16.msra.mxu0 0
        %508 = vmatprep.subr.bf16.mxu0 0
        %509 = vmatpush1.bf16.msra.mxu0 0
        %510 = vmatprep.subr.bf16.mxu0 0
        %511 = vmatpush1.bf16.msra.mxu0 0
        %512 = vmatprep.subr.bf16.mxu0 0
        %513 = vmatpush1.bf16.msra.mxu0 0
        %514 = vmatprep.subr.bf16.mxu0 0
        %515 = vmatpush1.bf16.msra.mxu0 0
        %516 = vmatprep.mubr.bf16.mxu0 0
        %517 = vmatmul.mubr.bf16.gmra.mrb[0].mxu0 %v468
        %v518 = vpop.f32.mrb[0].mxu0
        %v519 = vadd.f32 0.0, %v518
        %v520 = vpop.f32.mrb[0].mxu0
        %v521 = vpop.f32.mrb[0].mxu0
        %v522 = vadd.f32 0.0, %v521
        %v523 = vpop.f32.mrb[0].mxu0
        %524 = vmatprep.mubr.bf16.mxu0 0
        %525 = vmatmul.mubr.bf16.gmra.mrb[0].mxu0 %v469
        %v526 = vpop.f32.mrb[0].mxu0
        %v527 = vadd.f32 0.0, %v526
        %v528 = vpop.f32.mrb[0].mxu0
        %v529 = vpop.f32.mrb[0].mxu0
        %v530 = vadd.f32 0.0, %v529
        %v531 = vpop.f32.mrb[0].mxu0
        %532 = vmatprep.mubr.bf16.mxu0 0
        %533 = vmatmul.mubr.bf16.gmra.mrb[0].mxu0 %v470
        %v534 = vpop.f32.mrb[0].mxu0
        %v535 = vadd.f32 0.0, %v534
        %v536 = vpop.f32.mrb[0].mxu0
        %v537 = vpop.f32.mrb[0].mxu0
        %v538 = vadd.f32 0.0, %v537
        %v539 = vpop.f32.mrb[0].mxu0
        %540 = vmatprep.mubr.bf16.mxu0 0
        %541 = vmatmul.mubr.bf16.gmra.mrb[0].mxu0 %v471
        %v542 = vpop.f32.mrb[0].mxu0
        %v543 = vadd.f32 0.0, %v542
        %v544 = vpop.f32.mrb[0].mxu0
        %v545 = vpop.f32.mrb[0].mxu0
        %v546 = vadd.f32 0.0, %v545
        %v547 = vpop.f32.mrb[0].mxu0
        %548 = vmatprep.mubr.bf16.mxu0 0
        %549 = vmatmul.mubr.bf16.gmra.mrb[0].mxu0 %v472
        %v550 = vpop.f32.mrb[0].mxu0
        %v551 = vadd.f32 0.0, %v550
        %v552 = vpop.f32.mrb[0].mxu0
        %v553 = vpop.f32.mrb[0].mxu0
        %v554 = vadd.f32 0.0, %v553
        %v555 = vpop.f32.mrb[0].mxu0
        %556 = vmatprep.mubr.bf16.mxu0 0
        %557 = vmatmul.mubr.bf16.gmra.mrb[0].mxu0 %v473
        %v558 = vpop.f32.mrb[0].mxu0
        %v559 = vadd.f32 0.0, %v558
        %v560 = vpop.f32.mrb[0].mxu0
        %v561 = vpop.f32.mrb[0].mxu0
        %v562 = vadd.f32 0.0, %v561
        %v563 = vpop.f32.mrb[0].mxu0
        %564 = vmatprep.mubr.bf16.mxu0 0
        %565 = vmatmul.mubr.bf16.gmra.mrb[0].mxu0 %v474
        %v566 = vpop.f32.mrb[0].mxu0
        %v567 = vadd.f32 0.0, %v566
        %v568 = vpop.f32.mrb[0].mxu0
        %v569 = vpop.f32.mrb[0].mxu0
        %v570 = vadd.f32 0.0, %v569
        %v571 = vpop.f32.mrb[0].mxu0
        %572 = vmatprep.mubr.bf16.mxu0 0
        %573 = vmatmul.mubr.bf16.gmra.mrb[0].mxu0 %v475
        %v574 = vpop.f32.mrb[0].mxu0
        %v575 = vadd.f32 0.0, %v574
        %v576 = vpop.f32.mrb[0].mxu0
        %v577 = vpop.f32.mrb[0].mxu0
        %v578 = vadd.f32 0.0, %v577
        %v579 = vpop.f32.mrb[0].mxu0
        %580 = vdwg.mxu0
        %v581 = vadd.f32 %v404, %v519
        %v582 = vadd.f32 %v405, %v522
        %v583 = vadd.f32 %v406, %v527
        %v584 = vadd.f32 %v407, %v530
        %v585 = vadd.f32 %v408, %v535
        %v586 = vadd.f32 %v409, %v538
        %v587 = vadd.f32 %v410, %v543
        %v588 = vadd.f32 %v411, %v546
        %v589 = vadd.f32 %v412, %v551
        %v590 = vadd.f32 %v413, %v554
        %v591 = vadd.f32 %v414, %v559
        %v592 = vadd.f32 %v415, %v562
        %v593 = vadd.f32 %v416, %v567
        %v594 = vadd.f32 %v417, %v570
        %v595 = vadd.f32 %v418, %v575
        %v596 = vadd.f32 %v419, %v578
        %597 = vst [vmem:[#allocation2] sm:$0xff] %v581
        %598 = vst [vmem:[#allocation2 + $0x8] sm:$0xff] %v582
        %599 = vst [vmem:[#allocation2 + $0x10] sm:$0xff] %v583
        %600 = vst [vmem:[#allocation2 + $0x18] sm:$0xff] %v584
        %601 = vst [vmem:[#allocation2 + $0x20] sm:$0xff] %v585
        %602 = vst [vmem:[#allocation2 + $0x28] sm:$0xff] %v586
        %603 = vst [vmem:[#allocation2 + $0x30] sm:$0xff] %v587
        %604 = vst [vmem:[#allocation2 + $0x38] sm:$0xff] %v588
        %605 = vst [vmem:[#allocation2 + $0x40] sm:$0xff] %v589
        %606 = vst [vmem:[#allocation2 + $0x48] sm:$0xff] %v590
        %607 = vst [vmem:[#allocation2 + $0x50] sm:$0xff] %v591
        %608 = vst [vmem:[#allocation2 + $0x58] sm:$0xff] %v592
        %609 = vst [vmem:[#allocation2 + $0x60] sm:$0xff] %v593
        %610 = vst [vmem:[#allocation2 + $0x68] sm:$0xff] %v594
        %611 = vst [vmem:[#allocation2 + $0x70] sm:$0xff] %v595
        %612 = vst [vmem:[#allocation2 + $0x78] sm:$0xff] %v596
        // Predicated region
        $region57: #{tpu_custom_call.1} parent=35 // pred_check
          %p613 = pneg %p281
        $region58: #{tpu_custom_call.1} parent=35 // pred_check_branch
          %615 = sbr.rel (%p613) target = $region60
        $region59: #{tpu_custom_call.1} parent=35 // pred_region
          %v616 = vld [vmem:[#allocation2] sm:$0xff]
          %v617 = vld [vmem:[#allocation2 + $0x8] sm:$0xff]
          %v618 = vld [vmem:[#allocation2 + $0x10] sm:$0xff]
          %v619 = vld [vmem:[#allocation2 + $0x18] sm:$0xff]
          %v620 = vld [vmem:[#allocation2 + $0x20] sm:$0xff]
          %v621 = vld [vmem:[#allocation2 + $0x28] sm:$0xff]
          %v622 = vld [vmem:[#allocation2 + $0x30] sm:$0xff]
          %v623 = vld [vmem:[#allocation2 + $0x38] sm:$0xff]
          %v624 = vld [vmem:[#allocation2 + $0x40] sm:$0xff]
          %v625 = vld [vmem:[#allocation2 + $0x48] sm:$0xff]
          %v626 = vld [vmem:[#allocation2 + $0x50] sm:$0xff]
          %v627 = vld [vmem:[#allocation2 + $0x58] sm:$0xff]
          %v628 = vld [vmem:[#allocation2 + $0x60] sm:$0xff]
          %v629 = vld [vmem:[#allocation2 + $0x68] sm:$0xff]
          %v630 = vld [vmem:[#allocation2 + $0x70] sm:$0xff]
          %v631 = vld [vmem:[#allocation2 + $0x78] sm:$0xff]
          %v632 = vpack.c.bf16 %v617, %v616
          %v633 = vpack.c.bf16 %v619, %v618
          %v634 = vpack.c.bf16 %v621, %v620
          %v635 = vpack.c.bf16 %v623, %v622
          %v636 = vpack.c.bf16 %v625, %v624
          %v637 = vpack.c.bf16 %v627, %v626
          %v638 = vpack.c.bf16 %v629, %v628
          %v639 = vpack.c.bf16 %v631, %v630
          %v640 = vld [vmem:[%s249] sm:$0xf]
          %v641 = vld [vmem:[%s249 + $0x4] sm:$0xf]
          %v642 = vld [vmem:[%s249 + $0x8] sm:$0xf]
          %v643 = vld [vmem:[%s249 + $0xc] sm:$0xf]
          %v644 = vld [vmem:[%s249 + $0x10] sm:$0xf]
          %v645 = vld [vmem:[%s249 + $0x14] sm:$0xf]
          %v646 = vld [vmem:[%s249 + $0x18] sm:$0xf]
          %v647 = vld [vmem:[%s249 + $0x1c] sm:$0xf]
          %v648 = vld [vmem:[%s249 + $0x20] sm:$0xf]
          %v649 = vld [vmem:[%s249 + $0x24] sm:$0xf]
          %v650 = vld [vmem:[%s249 + $0x28] sm:$0xf]
          %v651 = vld [vmem:[%s249 + $0x2c] sm:$0xf]
          %v652 = vld [vmem:[%s249 + $0x30] sm:$0xf]
          %v653 = vld [vmem:[%s249 + $0x34] sm:$0xf]
          %v654 = vld [vmem:[%s249 + $0x38] sm:$0xf]
          %v655 = vld [vmem:[%s249 + $0x3c] sm:$0xf]
          %v656 = vld [vmem:[%s275] sm:$0x1]
          %v658 = vlaneseq
          %v659 = vshrl.u32 %v658, 7
          %v660 = vsub.s32 0, %v659
          %v661 = vrot.slane %v656, %v660
          %v679 = vunpack.c.l.b16 %v640
          %v680 = vunpack.c.l.b16 %v641
          %v681 = vunpack.c.l.b16 %v642
          %v682 = vunpack.c.l.b16 %v643
          %v683 = vunpack.c.l.b16 %v644
          %v684 = vunpack.c.l.b16 %v645
          %v685 = vunpack.c.l.b16 %v646
          %v686 = vunpack.c.l.b16 %v647
          %v687 = vunpack.c.l.b16 %v648
          %v688 = vunpack.c.l.b16 %v649
          %v689 = vunpack.c.l.b16 %v650
          %v690 = vunpack.c.l.b16 %v651
          %v691 = vunpack.c.l.b16 %v652
          %v692 = vunpack.c.l.b16 %v653
          %v693 = vunpack.c.l.b16 %v654
          %v694 = vunpack.c.l.b16 %v655
          %v695 = vpack.c.b16 %v680, %v679
          %v696 = vpack.c.b16 %v682, %v681
          %v697 = vpack.c.b16 %v684, %v683
          %v698 = vpack.c.b16 %v686, %v685
          %v699 = vpack.c.b16 %v688, %v687
          %v700 = vpack.c.b16 %v690, %v689
          %v701 = vpack.c.b16 %v692, %v691
          %v702 = vpack.c.b16 %v694, %v693
          %711 = vmatprep.subr.bf16.mxu0 0
          %712 = vmatpush1.bf16.msra.mxu0 %v695
          %713 = vmatprep.subr.bf16.mxu0 0
          %714 = vmatpush1.bf16.msra.mxu0 %v696
          %715 = vmatprep.subr.bf16.mxu0 0
          %716 = vmatpush1.bf16.msra.mxu0 %v697
          %717 = vmatprep.subr.bf16.mxu0 0
          %718 = vmatpush1.bf16.msra.mxu0 %v698
          %719 = vmatprep.subr.bf16.mxu0 0
          %720 = vmatpush1.bf16.msra.mxu0 %v699
          %721 = vmatprep.subr.bf16.mxu0 0
          %722 = vmatpush1.bf16.msra.mxu0 %v700
          %723 = vmatprep.subr.bf16.mxu0 0
          %724 = vmatpush1.bf16.msra.mxu0 %v701
          %725 = vmatprep.subr.bf16.mxu0 0
          %726 = vmatpush1.bf16.msra.mxu0 %v702
          %727 = vmatprep.subr.bf16.mxu0 0
          %728 = vmatpush1.bf16.msra.mxu0 0
          %729 = vmatprep.subr.bf16.mxu0 0
          %730 = vmatpush1.bf16.msra.mxu0 0
          %731 = vmatprep.subr.bf16.mxu0 0
          %732 = vmatpush1.bf16.msra.mxu0 0
          %733 = vmatprep.subr.bf16.mxu0 0
          %734 = vmatpush1.bf16.msra.mxu0 0
          %735 = vmatprep.subr.bf16.mxu0 0
          %736 = vmatpush1.bf16.msra.mxu0 0
          %737 = vmatprep.subr.bf16.mxu0 0
          %738 = vmatpush1.bf16.msra.mxu0 0
          %739 = vmatprep.subr.bf16.mxu0 0
          %740 = vmatpush1.bf16.msra.mxu0 0
          %741 = vmatprep.subr.bf16.mxu0 0
          %742 = vmatpush1.bf16.msra.mxu0 0
          %743 = vmatprep.mubr.bf16.mxu0 0
          %744 = vmatmul.mubr.bf16.gmra.mrb[0].mxu0 %v632
          %v745 = vpop.f32.mrb[0].mxu0
          %v746 = vadd.f32 %v661, %v745
          %v747 = vpop.f32.mrb[0].mxu0
          %v748 = vpop.f32.mrb[0].mxu0
          %v749 = vadd.f32 %v661, %v748
          %v750 = vpop.f32.mrb[0].mxu0
          %751 = vmatprep.mubr.bf16.mxu0 0
          %752 = vmatmul.mubr.bf16.gmra.mrb[0].mxu0 %v633
          %v753 = vpop.f32.mrb[0].mxu0
          %v754 = vadd.f32 %v661, %v753
          %v755 = vpop.f32.mrb[0].mxu0
          %v756 = vpop.f32.mrb[0].mxu0
          %v757 = vadd.f32 %v661, %v756
          %v758 = vpop.f32.mrb[0].mxu0
          %759 = vmatprep.mubr.bf16.mxu0 0
          %760 = vmatmul.mubr.bf16.gmra.mrb[0].mxu0 %v634
          %v761 = vpop.f32.mrb[0].mxu0
          %v762 = vadd.f32 %v661, %v761
          %v763 = vpop.f32.mrb[0].mxu0
          %v764 = vpop.f32.mrb[0].mxu0
          %v765 = vadd.f32 %v661, %v764
          %v766 = vpop.f32.mrb[0].mxu0
          %767 = vmatprep.mubr.bf16.mxu0 0
          %768 = vmatmul.mubr.bf16.gmra.mrb[0].mxu0 %v635
          %v769 = vpop.f32.mrb[0].mxu0
          %v770 = vadd.f32 %v661, %v769
          %v771 = vpop.f32.mrb[0].mxu0
          %v772 = vpop.f32.mrb[0].mxu0
          %v773 = vadd.f32 %v661, %v772
          %v774 = vpop.f32.mrb[0].mxu0
          %775 = vmatprep.mubr.bf16.mxu0 0
          %776 = vmatmul.mubr.bf16.gmra.mrb[0].mxu0 %v636
          %v777 = vpop.f32.mrb[0].mxu0
          %v778 = vadd.f32 %v661, %v777
          %v779 = vpop.f32.mrb[0].mxu0
          %v780 = vpop.f32.mrb[0].mxu0
          %v781 = vadd.f32 %v661, %v780
          %v782 = vpop.f32.mrb[0].mxu0
          %783 = vmatprep.mubr.bf16.mxu0 0
          %784 = vmatmul.mubr.bf16.gmra.mrb[0].mxu0 %v637
          %v785 = vpop.f32.mrb[0].mxu0
          %v786 = vadd.f32 %v661, %v785
          %v787 = vpop.f32.mrb[0].mxu0
          %v788 = vpop.f32.mrb[0].mxu0
          %v789 = vadd.f32 %v661, %v788
          %v790 = vpop.f32.mrb[0].mxu0
          %791 = vmatprep.mubr.bf16.mxu0 0
          %792 = vmatmul.mubr.bf16.gmra.mrb[0].mxu0 %v638
          %v793 = vpop.f32.mrb[0].mxu0
          %v794 = vadd.f32 %v661, %v793
          %v795 = vpop.f32.mrb[0].mxu0
          %v796 = vpop.f32.mrb[0].mxu0
          %v797 = vadd.f32 %v661, %v796
          %v798 = vpop.f32.mrb[0].mxu0
          %799 = vmatprep.mubr.bf16.mxu0 0
          %800 = vmatmul.mubr.bf16.gmra.mrb[0].mxu0 %v639
          %v801 = vpop.f32.mrb[0].mxu0
          %v802 = vadd.f32 %v661, %v801
          %v803 = vpop.f32.mrb[0].mxu0
          %v804 = vpop.f32.mrb[0].mxu0
          %v805 = vadd.f32 %v661, %v804
          %v806 = vpop.f32.mrb[0].mxu0
          %807 = vdwg.mxu0
          %s808 = smul.u32 %s24, 128
          %p809 = scmp.lt.s32.totalorder %s23, 1
          // Predicated region
          $region61: #{tpu_custom_call.1} parent=59 // pred_check
            %p810 = pneg %p809
          $region62: #{tpu_custom_call.1} parent=59 // pred_check_branch
            %812 = sbr.rel (%p810) target = $region64
          $region63: #{tpu_custom_call.1} parent=59 // pred_region
            %v813 = vpack.c.bf16 %v749, %v746
            %v814 = vpack.c.bf16 %v757, %v754
            %v815 = vpack.c.bf16 %v765, %v762
            %v816 = vpack.c.bf16 %v773, %v770
            %v817 = vpack.c.bf16 %v781, %v778
            %v818 = vpack.c.bf16 %v789, %v786
            %v819 = vpack.c.bf16 %v797, %v794
            %v820 = vpack.c.bf16 %v805, %v802
            %s821 = ssub.s32 1, %s369
            %s822 = sshra.s32 %s808, 4
            %s823 = sand.u32 %s808, 15
            %s824 = smul.u32 %s821, 8
            %s825 = sadd.s32 %s822, %s824
            %s826 = smul.addr %s825, 8
            %s827 = scalar_lea.vmem [#allocation3], %s826
            %828 = vst [vmem:[%s827] sm:$0xff] %v813
            %829 = vst [vmem:[%s827 + $0x8] sm:$0xff] %v814
            %830 = vst [vmem:[%s827 + $0x10] sm:$0xff] %v815
            %831 = vst [vmem:[%s827 + $0x18] sm:$0xff] %v816
            %832 = vst [vmem:[%s827 + $0x20] sm:$0xff] %v817
            %833 = vst [vmem:[%s827 + $0x28] sm:$0xff] %v818
            %834 = vst [vmem:[%s827 + $0x30] sm:$0xff] %v819
            %835 = vst [vmem:[%s827 + $0x38] sm:$0xff] %v820
          $region64: #{tpu_custom_call.1} parent=59 // pred_fallthru
            _
          %p836 = scmp.eq.s32.totalorder %s23, 1
          // Predicated region
          $region65: #{tpu_custom_call.1} parent=59 // pred_check
            %p837 = pneg %p836
          $region66: #{tpu_custom_call.1} parent=59 // pred_check_branch
            %839 = sbr.rel (%p837) target = $region68
          $region67: #{tpu_custom_call.1} parent=59 // pred_region
            %s840 = scalar_lea.vmem [#allocation10], %s808
            %841 = vst [vmem:[%s840] sm:$0xff] %v746
            %842 = vst [vmem:[%s840 + $0x8] sm:$0xff] %v749
            %843 = vst [vmem:[%s840 + $0x10] sm:$0xff] %v754
            %844 = vst [vmem:[%s840 + $0x18] sm:$0xff] %v757
            %845 = vst [vmem:[%s840 + $0x20] sm:$0xff] %v762
            %846 = vst [vmem:[%s840 + $0x28] sm:$0xff] %v765
            %847 = vst [vmem:[%s840 + $0x30] sm:$0xff] %v770
            %848 = vst [vmem:[%s840 + $0x38] sm:$0xff] %v773
            %849 = vst [vmem:[%s840 + $0x40] sm:$0xff] %v778
            %850 = vst [vmem:[%s840 + $0x48] sm:$0xff] %v781
            %851 = vst [vmem:[%s840 + $0x50] sm:$0xff] %v786
            %852 = vst [vmem:[%s840 + $0x58] sm:$0xff] %v789
            %853 = vst [vmem:[%s840 + $0x60] sm:$0xff] %v794
            %854 = vst [vmem:[%s840 + $0x68] sm:$0xff] %v797
            %855 = vst [vmem:[%s840 + $0x70] sm:$0xff] %v802
            %856 = vst [vmem:[%s840 + $0x78] sm:$0xff] %v805
          $region68: #{tpu_custom_call.1} parent=59 // pred_fallthru
            _
        $region60: #{tpu_custom_call.1} parent=35 // pred_fallthru
          _
        // Predicated region
        $region69: #{tpu_custom_call.1} parent=35 // pred_check
          %p857 = pneg %p151
        $region70: #{tpu_custom_call.1} parent=35 // pred_check_branch
          %859 = sbr.rel (%p857) target = $region72
        $region71: #{tpu_custom_call.1} parent=35 // pred_region
          %s861 = ssub.s32 2048, 2048
          %862 = vsyncadd [#allocation6], %s861
          %s863 = sshll.u32 [#allocation10], 4
          %s864 = int_to_ptr.vmem [resolvable:$true] %s863
          %869 = dma.vmem_to_hbm [thread:$0]  %s864, 2048, %s4, [#allocation6], 128, 128, 8
        $region72: #{tpu_custom_call.1} parent=35 // pred_fallthru
          _
        // Predicated region
        $region73: #{tpu_custom_call.1} parent=35 // pred_check
          %p870 = pneg %p151
        $region74: #{tpu_custom_call.1} parent=35 // pred_check_branch
          %872 = sbr.rel (%p870) target = $region76
        $region75: #{tpu_custom_call.1} parent=35 // pred_region
          %873 = dma.done [#allocation6], 2048
        $region76: #{tpu_custom_call.1} parent=35 // pred_fallthru
          _
      $region36: #{tpu_custom_call.1} parent=5 // pred_fallthru
        _
      %p874 = scmp.le.s32.totalorder 2, %s13
      // Predicated region
      $region77: #{tpu_custom_call.1} parent=5 // pred_check
        %p875 = pneg %p874
      $region78: #{tpu_custom_call.1} parent=5 // pred_check_branch
        %877 = sbr.rel (%p875) target = $region80
      $region79: #{tpu_custom_call.1} parent=5 // pred_region
        %s878 = ssub.s32 %s13, 2
      $region80: #{tpu_custom_call.1} parent=5 // pred_fallthru
        _
    $region6: #{tpu_custom_call.1} parent=1 // loop_footer
      %s17 = sadd.s32 1, %s13
    $region7: #{tpu_custom_call.1} parent=1 // loop_footer_branch
      %12 = sbr.rel target = $region3
    $region8: #{tpu_custom_call.1} parent=1 // loop_exit
      _
    %879 = vsyncpa [#allocation5], 1
    %s880 = scalar_lea.sflag [#allocation5], 1
    %881 = vsyncpa %s880, 1
    %882 = vsyncpa [#allocation8], 1
    %883 = vsyncpa [#allocation6], 1
    %s884 = scalar_lea.sflag [#allocation6], 1
    %885 = vsyncpa %s884, 1

</llo_original>
